<compile_context>
chip_gen: v5e
topology: v5e:2x2
jax: 0.10.0
libtpu: 0.0.40
codegen_flags: <defaults>
</compile_context>

<pallas_src>
import math
from functools import partial

import jax
import jax.numpy as jnp
from jax.experimental import pallas as pl
from jax.experimental.pallas import tpu as pltpu


def _round_up(v, m):
    return ((v + m - 1) // m) * m


def _matmul_kernel(*refs, has_bias):
    if has_bias:
        x_ref, w_ref, scale_ref, b_ref, o_ref, acc_ref = refs
    else:
        x_ref, w_ref, scale_ref, o_ref, acc_ref = refs
        b_ref = None

    k_idx = pl.program_id(2)

    @pl.when(k_idx == 0)
    def _():
        acc_ref[...] = jnp.zeros_like(acc_ref)

    # Ternary weights arrive pre-quantized as int8 {-1, 0, +1} in [K, N] layout.
    # Cast to the activation dtype (exact for ternary values) so the dot is a
    # native MXU matmul on every generation (v7x has no int8 MXU mode) and runs
    # at the bf16 rate when x is bf16.
    acc_ref[...] += jnp.dot(
        x_ref[...], w_ref[...].astype(x_ref.dtype),
        preferred_element_type=jnp.float32)

    @pl.when(k_idx == pl.num_programs(2) - 1)
    def _():
        out = acc_ref[...] * scale_ref[...]          # per-column abs_mean scale
        if has_bias:
            out = out + b_ref[...]
        o_ref[...] = out.astype(o_ref.dtype)


def _default_vmem_limit_bytes():
    cap = 128 * 1024 * 1024
    try:
        cap = int(pltpu.get_tpu_info().vmem_capacity_bytes)
    except Exception:
        pass
    # Leave headroom for Mosaic internal scratch / double buffers:
    # ~48 MiB on v7x (64 MiB physical), ~96 MiB on v5e/v6e (128 MiB physical).
    return min(cap * 3 // 4, 100 * 1024 * 1024)


def bitlinear_forward(x, weight, bias=None, scale_factor=0.5, *,
                      tm=512, tn=512, tk=1024, vmem_limit_bytes=None):
    """x: [*, in_features]; weight: [out, in]; bias: [out] or None."""
    n, k = weight.shape
    lead_shape = x.shape[:-1]
    m = int(math.prod(lead_shape)) if lead_shape else 1
    x2d = x.reshape(m, k)

    # ---- one-shot prepass (wrapper, not per-tile): quantize W, compute scale ----
    w_f32 = weight.astype(jnp.float32)
    abs_mean = jnp.mean(jnp.abs(w_f32), axis=1)                  # (N,) f32
    thr = (float(scale_factor) * abs_mean)[:, None]              # (N, 1), thr >= 0
    # (w > thr) - (w < -thr)  ==  where(|w| > thr, sign(w), 0), without abs/sign.
    ternary = ((w_f32 > thr).astype(jnp.int8)
               - (w_f32 < -thr).astype(jnp.int8))                # {-1,0,+1} int8
    w_kn = ternary.T                                             # [K, N] MXU-canonical

    # ---- tiling --------------------------------------------------------------
    x_isz = jnp.dtype(x.dtype).itemsize
    sub = max(8, 32 // x_isz)          # dtype-native sublane multiple: 8 f32, 16 bf16
    tm = min(tm, _round_up(m, sub))
    tn = min(tn, _round_up(n, 128))
    tk = min(tk, _round_up(k, 128))

    def _gdim(size, tile):
        return _round_up(size, tile) // tile

    # v7x has 2 TensorCores: guarantee >= 2 parallel (M, N) tiles when splittable.
    if _gdim(m, tm) * _gdim(n, tn) < 2:
        if tm >= 2 * sub and (tm // 2) % sub == 0 and _gdim(m, tm // 2) >= 2:
            tm //= 2
        elif tn >= 256 and _gdim(n, tn // 2) >= 2:
            tn //= 2

    m_p, n_p, k_p = _round_up(m, tm), _round_up(n, tn), _round_up(k, tk)

    x_p = x2d if (m_p, k_p) == (m, k) else jnp.pad(x2d, ((0, m_p - m), (0, k_p - k)))
    w_p = w_kn if (k_p, n_p) == (k, n) else jnp.pad(w_kn, ((0, k_p - k), (0, n_p - n)))
    scale_row = abs_mean.reshape(1, n)
    if n_p != n:
        scale_row = jnp.pad(scale_row, ((0, 0), (0, n_p - n)))

    has_bias = bias is not None
    inputs = [x_p, w_p, scale_row]
    in_specs = [
        pl.BlockSpec((tm, tk), lambda i, j, kk: (i, kk)),   # activations
        pl.BlockSpec((tk, tn), lambda i, j, kk: (kk, j)),   # int8 ternary W, [K, N]
        pl.BlockSpec((1, tn), lambda i, j, kk: (0, j)),     # abs_mean epilogue scale
    ]
    if has_bias:
        b_row = bias.reshape(1, n).astype(jnp.float32)
        if n_p != n:
            b_row = jnp.pad(b_row, ((0, 0), (0, n_p - n)))
        inputs.append(b_row)
        in_specs.append(pl.BlockSpec((1, tn), lambda i, j, kk: (0, j)))

    grid = (m_p // tm, n_p // tn, k_p // tk)

    # Advisory cost: account for tile re-reads (x per N tile, W per M tile).
    cost = pl.CostEstimate(
        flops=2 * m_p * n_p * k_p,
        transcendentals=0,
        bytes_accessed=(m_p * k_p * x_isz * (n_p // tn)
                        + k_p * n_p * 1 * (m_p // tm)
                        + m_p * n_p * x_isz))

    if vmem_limit_bytes is None:
        vmem_limit_bytes = _default_vmem_limit_bytes()

    out2d = pl.pallas_call(
        partial(_matmul_kernel, has_bias=has_bias),
        out_shape=jax.ShapeDtypeStruct((m_p, n_p), x.dtype),
        grid_spec=pltpu.PrefetchScalarGridSpec(
            num_scalar_prefetch=0,
            grid=grid,
            in_specs=in_specs,
            out_specs=pl.BlockSpec((tm, tn), lambda i, j, kk: (i, j)),
            scratch_shapes=[pltpu.VMEM((tm, tn), jnp.float32)],
        ),
        compiler_params=pltpu.CompilerParams(
            dimension_semantics=("parallel", "parallel", "arbitrary"),
            vmem_limit_bytes=int(vmem_limit_bytes)),
        cost_estimate=cost,
    )(*inputs)

    out = out2d[:m, :n]
    return out.reshape(*lead_shape, n)


def init_bitlinear_params(key, in_features, out_features, use_bias=True):
    """Deterministic init matching nn.Linear/BitLinear reset_parameters()."""
    kw, kb = jax.random.split(key)
    # kaiming_uniform_ with a=sqrt(5) -> bound = 1/sqrt(fan_in)
    bound = 1.0 / math.sqrt(in_features)
    weight = jax.random.uniform(kw, (out_features, in_features), jnp.float32,
                                -bound, bound)
    bias = None
    if use_bias:
        bias = jax.random.uniform(kb, (out_features,), jnp.float32, -bound, bound)
    return weight, bias


def bitlinear_reference(x, weight, bias, scale_factor=0.5):
    """Pure-JAX reference of the eval-mode forward pass (f32 math)."""
    abs_mean = jnp.mean(jnp.abs(weight), axis=1, keepdims=True)
    threshold = scale_factor * abs_mean
    ternary = jnp.where(jnp.abs(weight) > threshold, jnp.sign(weight),
                        jnp.zeros_like(weight))
    q_w = ternary * abs_mean
    out = x.astype(jnp.float32) @ q_w.T
    if bias is not None:
        out = out + bias
    return out


if __name__ == "__main__":
    key = jax.random.PRNGKey(0)
    k_x, k_p, k_x2, k_p2 = jax.random.split(key, 4)

    # Case 1: tiny shapes, f32, with bias (single N/K tile, split M for megacore).
    batch, seq, in_f, out_f = 2, 8, 32, 32
    x = jax.random.normal(k_x, (batch, seq, in_f), dtype=jnp.float32)
    weight, bias = init_bitlinear_params(k_p, in_f, out_f, use_bias=True)
    out = jax.block_until_ready(bitlinear_forward(x, weight, bias, scale_factor=0.5))
    ref = bitlinear_reference(x, weight, bias, scale_factor=0.5)
    assert out.shape == (batch, seq, out_f)
    assert jnp.allclose(out, ref, atol=1e-4, rtol=1e-4), "case1 mismatch vs reference"

    # Case 2: K padding (640 -> tile 640), no bias, f32.
    batch2, seq2, in_f2, out_f2 = 4, 32, 640, 256
    x2 = jax.random.normal(k_x2, (batch2, seq2, in_f2), dtype=jnp.float32)
    w2, _ = init_bitlinear_params(k_p2, in_f2, out_f2, use_bias=False)
    out2 = jax.block_until_ready(bitlinear_forward(x2, w2, None))
    ref2 = bitlinear_reference(x2, w2, None)
    assert out2.shape == (batch2, seq2, out_f2)
    assert jnp.allclose(out2, ref2, atol=1e-3, rtol=1e-3), "case2 mismatch vs reference"

    # Case 3: bf16 activations -> bf16 MXU operands (int8 ternary cast to bf16 exactly).
    x3 = x2.astype(jnp.bfloat16)
    out3 = jax.block_until_ready(bitlinear_forward(x3, w2, None))
    ref3 = bitlinear_reference(x3, w2, None)
    assert jnp.allclose(out3.astype(jnp.float32), ref3, atol=5e-2, rtol=5e-2), \
        "case3 mismatch vs reference"

    print("KERNEL_OK")
</pallas_src>

<mosaic_0001>
module attributes {stable_mosaic.version = 11 : i64} {
  func.func @_matmul_kernel(%arg0: i32, %arg1: i32, %arg2: i32, %arg3: memref<8x128xf32, #tpu.memory_space<vmem>>, %arg4: memref<128x128xi8, #tpu.memory_space<vmem>>, %arg5: memref<1x128xf32, #tpu.memory_space<vmem>>, %arg6: memref<1x128xf32, #tpu.memory_space<vmem>>, %arg7: memref<8x128xf32, #tpu.memory_space<vmem>>, %arg8: memref<8x128xf32, #tpu.memory_space<vmem>>) attributes {dimension_semantics = [#tpu.dimension_semantics<parallel>, #tpu.dimension_semantics<parallel>, #tpu.dimension_semantics<arbitrary>], iteration_bounds = array<i64: 2, 1, 1>, scalar_prefetch = 0 : i64, scratch_operands = 1 : i64, tpu.core_type = #tpu.core_type<tc>, window_params = [{transform_indices = @transform_0, window_bounds = array<i64: 8, 128>}, {transform_indices = @transform_1, window_bounds = array<i64: 128, 128>}, {transform_indices = @transform_2, window_bounds = array<i64: 1, 128>}, {transform_indices = @transform_3, window_bounds = array<i64: 1, 128>}, {transform_indices = @transform_4, window_bounds = array<i64: 8, 128>}]} {
    %c0_i32 = arith.constant 0 : i32
    %0 = arith.cmpi eq, %arg2, %c0_i32 : i32
    %1 = arith.extui %0 : i1 to i32
    %c0_i32_0 = arith.constant 0 : i32
    %2 = arith.cmpi ne, %1, %c0_i32_0 : i32
    scf.if %2 {
      %cst_10 = arith.constant 0.000000e+00 : f32
      %13 = vector.broadcast %cst_10 : f32 to vector<8x128xf32>
      %c0_11 = arith.constant 0 : index
      %c0_12 = arith.constant 0 : index
      %14 = vector.load %arg8[%c0_11, %c0_12] : memref<8x128xf32, #tpu.memory_space<vmem>>, vector<8x128xf32>
      tpu.vector_store %arg8[%c0_11, %c0_12], %13 {strides = array<i32>} : memref<8x128xf32, #tpu.memory_space<vmem>>, vector<8x128xf32>,
    } else {
    }
    %c0 = arith.constant 0 : index
    %c0_1 = arith.constant 0 : index
    %3 = vector.load %arg8[%c0, %c0_1] : memref<8x128xf32, #tpu.memory_space<vmem>>, vector<8x128xf32>
    %c0_2 = arith.constant 0 : index
    %c0_3 = arith.constant 0 : index
    %4 = vector.load %arg3[%c0_2, %c0_3] : memref<8x128xf32, #tpu.memory_space<vmem>>, vector<8x128xf32>
    %c0_4 = arith.constant 0 : index
    %c0_5 = arith.constant 0 : index
    %5 = vector.load %arg4[%c0_4, %c0_5] : memref<128x128xi8, #tpu.memory_space<vmem>>, vector<128x128xi8>
    %6 = arith.sitofp %5 : vector<128x128xi8> to vector<128x128xf32>
    %cst = arith.constant dense<0.000000e+00> : vector<8x128xf32>
    %7 = tpu.matmul %4, %6, %cst {dimension_numbers = #tpu.dot_dimension_numbers<[1], [0], [0], [1], [0, 0, 1, 1], [], []>} : vector<8x128xf32>, vector<128x128xf32>, vector<8x128xf32> -> vector<8x128xf32>
    %8 = arith.addf %3, %7 : vector<8x128xf32>
    %c0_6 = arith.constant 0 : index
    %c0_7 = arith.constant 0 : index
    %9 = vector.load %arg8[%c0_6, %c0_7] : memref<8x128xf32, #tpu.memory_space<vmem>>, vector<8x128xf32>
    tpu.vector_store %arg8[%c0_6, %c0_7], %8 {strides = array<i32>} : memref<8x128xf32, #tpu.memory_space<vmem>>, vector<8x128xf32>,
    %c0_i32_8 = arith.constant 0 : i32
    %10 = arith.cmpi eq, %arg2, %c0_i32_8 : i32
    %11 = arith.extui %10 : i1 to i32
    %c0_i32_9 = arith.constant 0 : i32
    %12 = arith.cmpi ne, %11, %c0_i32_9 : i32
    scf.if %12 {
      %c0_10 = arith.constant 0 : index
      %c0_11 = arith.constant 0 : index
      %13 = vector.load %arg8[%c0_10, %c0_11] : memref<8x128xf32, #tpu.memory_space<vmem>>, vector<8x128xf32>
      %c0_12 = arith.constant 0 : index
      %c0_13 = arith.constant 0 : index
      %14 = vector.load %arg5[%c0_12, %c0_13] : memref<1x128xf32, #tpu.memory_space<vmem>>, vector<1x128xf32>
      %15 = vector.broadcast %14 : vector<1x128xf32> to vector<8x128xf32>
      %16 = arith.mulf %13, %15 : vector<8x128xf32>
      %c0_14 = arith.constant 0 : index
      %c0_15 = arith.constant 0 : index
      %17 = vector.load %arg6[%c0_14, %c0_15] : memref<1x128xf32, #tpu.memory_space<vmem>>, vector<1x128xf32>
      %18 = vector.broadcast %17 : vector<1x128xf32> to vector<8x128xf32>
      %19 = arith.addf %16, %18 : vector<8x128xf32>
      %c0_16 = arith.constant 0 : index
      %c0_17 = arith.constant 0 : index
      %20 = vector.load %arg7[%c0_16, %c0_17] : memref<8x128xf32, #tpu.memory_space<vmem>>, vector<8x128xf32>
      tpu.vector_store %arg7[%c0_16, %c0_17], %19 {strides = array<i32>} : memref<8x128xf32, #tpu.memory_space<vmem>>, vector<8x128xf32>,
    } else {
    }
    return
  }
  func.func @transform_0(%arg0: i32, %arg1: i32, %arg2: i32) -> (i32, i32) {
    %c0_i32 = arith.constant 0 : i32
    return %arg0, %arg2 : i32, i32
  }
  func.func @transform_1(%arg0: i32, %arg1: i32, %arg2: i32) -> (i32, i32) {
    %c0_i32 = arith.constant 0 : i32
    return %arg2, %arg1 : i32, i32
  }
  func.func @transform_2(%arg0: i32, %arg1: i32, %arg2: i32) -> (i32, i32) {
    %c0_i32 = arith.constant 0 : i32
    %c0_i32_0 = arith.constant 0 : i32
    return %c0_i32, %arg1 : i32, i32
  }
  func.func @transform_3(%arg0: i32, %arg1: i32, %arg2: i32) -> (i32, i32) {
    %c0_i32 = arith.constant 0 : i32
    %c0_i32_0 = arith.constant 0 : i32
    return %c0_i32, %arg1 : i32, i32
  }
  func.func @transform_4(%arg0: i32, %arg1: i32, %arg2: i32) -> (i32, i32) {
    %c0_i32 = arith.constant 0 : i32
    return %arg0, %arg1 : i32, i32
  }
}

</mosaic_0001>

<llo_original>
// kernel: tpu_custom_call.1
$region0: #{tpu_custom_call.1}
  #allocation0 [shape = 'u32[]', space=smem, size = 0x4, offset = 0x4, fixed_abs, tag = 'smem constant byte address 0x4 - core index']
  #allocation1 [shape = 'u32[72,128]{1,0:T(1,128)}', space=vmem, size = 0x9000, scoped, tag = 'internal scratch']
  #allocation2 [shape = 'f32[8,128]{1,0:T(8,128)}', space=vmem, size = 0x1000, scoped, tag = 'scratch operand']
  %s0 = inlined_call_operand.hbm [shape: f32[16,128], index: 0, kind: input, shape index: {}]
  %s1 = inlined_call_operand.hbm [shape: s8[128,128], index: 1, kind: input, shape index: {}]
  %s2 = inlined_call_operand.vmem [shape: f32[1,128], index: 2, kind: input, shape index: {}]
  %s3 = inlined_call_operand.vmem [shape: f32[1,128], index: 3, kind: input, shape index: {}]
  %s4 = inlined_call_operand.hbm [shape: f32[16,128], index: 4, kind: output, shape index: {}]
  %s5 = sld [smem:[#allocation0]]
  $region65: #{tpu_custom_call.1} parent=0
    _
  %s7 = ssub.s32 1, %s5
  %s8 = scalar_select 0, %s7, %s5
  $region1: #{tpu_custom_call.1} parent=0
    #allocation3 [shape = 'u8[8192]{0}', space=vmem, size = 0x2000, scoped, tag = 'input window, operand 0']
    #allocation4 [shape = 's32[2]{0}', space=sflag, size = 0x8, scoped, tag = 'scoped memory for tpu_custom_call.1']
    #allocation5 [shape = 's32[2]{0}', space=sflag, size = 0x8, scoped, tag = 'scoped memory for tpu_custom_call.1']
    #allocation6 [shape = 'u8[16384]{0}', space=vmem, size = 0x4000, scoped, tag = 'input window, operand 1, single buffered']
    #allocation7 [shape = 's32[1]{0}', space=sflag, size = 0x4, scoped, tag = 'scoped memory for tpu_custom_call.1']
    #allocation8 [shape = 'u8[8192]{0}', space=vmem, size = 0x2000, scoped, tag = 'output window, operand 0']
    %9 = vsyncpa [#allocation4], 0
    %s10 = scalar_lea.sflag [#allocation4], 1
    %11 = vsyncpa %s10, 0
    %12 = vsyncpa [#allocation7], 0
    %13 = vsyncpa [#allocation5], 0
    %s14 = scalar_lea.sflag [#allocation5], 1
    %15 = vsyncpa %s14, 0
    loop: start=0, step=1, limit=4
    $region2: #{tpu_custom_call.1} parent=1 // loop_pre_header
      _
    $region3: #{tpu_custom_call.1} parent=1 // loop_header
      %s17 = sphi 0, %s21
      %p18 = scmp.ge.s32.totalorder %s17, 4
      %s24 = sphi 0, %s43
      %s25 = sphi 0, %s39
      %s26 = sphi 0, %s35
      %s27 = sphi 0, %s24
      %s28 = sphi 0, %s25
      %s29 = sphi 0, %s26
      %s30 = sphi 0, %s27
      %s31 = sphi 0, %s28
      %s32 = sphi 0, %s29
      %s48 = sphi 0, %s50
      %s51 = sphi 0, %s48
      %s52 = sphi 0, %s51
      %s68 = sphi 0, %s52
      %s76 = sphi 0, %s78
      %s79 = sphi 0, %s76
      %s80 = sphi 0, %s79
      %s96 = sphi 0, %s80
      %s102 = sphi 0, %s104
      %s105 = sphi 0, %s102
      %s106 = sphi 0, %s105
      %s122 = sphi 0, %s106
      %s128 = sphi 0, %s130
      %s131 = sphi 0, %s128
      %s132 = sphi 0, %s131
      %s148 = sphi 0, %s132
      %s156 = sphi 0, %s158
      %s159 = sphi 0, %s156
      %s160 = sphi 0, %s159
      %s176 = sphi 0, %s160
    $region4: #{tpu_custom_call.1} parent=1 // loop_header_branch
      %20 = sbr.rel (%p18) target = $region8
    $region5: #{tpu_custom_call.1} parent=1 // loop_body
      %s22 = ssub.s32 %s17, 1
      %s23 = ssub.s32 %s17, 2
      %s33 = sadd.s32 1, %s26
      %p34 = scmp.ge.s32.totalorder %s33, 1
      %s35 = scalar_select %p34, 0, %s33
      %s36 = sadd.s32 1, %s25
      %s37 = scalar_select %p34, %s36, %s25
      %p38 = scmp.ge.s32.totalorder %s37, 1
      %s39 = scalar_select %p38, 0, %s37
      %s40 = sadd.s32 1, %s24
      %s41 = scalar_select %p38, %s40, %s24
      %p42 = scmp.ge.s32.totalorder %s41, 2
      %s43 = scalar_select %p42, 0, %s41
      %s44 = ssub.s32 %s24, %s43
      %s45 = ssub.s32 %s26, %s35
      %s46 = sor.u32 %s44, %s45
      %p47 = scmp.eq.s32.totalorder %s46, 0
      %s49 = sadd.s32 %s48, 1
      %s50 = scalar_select %p47, %s48, %s49
      %p53 = pneg %p47
      %p54 = scmp.eq.s32.totalorder %s17, 1
      %p55 = por %p53, %p54
      %p56 = scmp.ne.s32.totalorder %s48, %s51
      %p57 = scmp.eq.s32.totalorder %s17, 0
      %p58 = por %p56, %p57
      %p59 = scmp.ne.s32.totalorder %s48, %s51
      %p60 = scmp.eq.s32.totalorder %s22, 1
      %p61 = por %p59, %p60
      %p62 = scmp.ne.s32.totalorder %s51, %s52
      %p63 = scmp.eq.s32.totalorder %s22, 0
      %p64 = por %p62, %p63
      %p65 = scmp.ne.s32.totalorder %s51, %s52
      %p66 = scmp.eq.s32.totalorder %s23, 1
      %p67 = por %p65, %p66
      %p69 = scmp.ne.s32.totalorder %s52, %s68
      %p70 = scmp.eq.s32.totalorder %s23, 0
      %p71 = por %p69, %p70
      %s72 = ssub.s32 %s26, %s35
      %s73 = ssub.s32 %s25, %s39
      %s74 = sor.u32 %s72, %s73
      %p75 = scmp.eq.s32.totalorder %s74, 0
      %s77 = sadd.s32 %s76, 1
      %s78 = scalar_select %p75, %s76, %s77
      %p81 = pneg %p75
      %p82 = scmp.eq.s32.totalorder %s17, 1
      %p83 = por %p81, %p82
      %p84 = scmp.ne.s32.totalorder %s76, %s79
      %p85 = scmp.eq.s32.totalorder %s17, 0
      %p86 = por %p84, %p85
      %p87 = scmp.ne.s32.totalorder %s76, %s79
      %p88 = scmp.eq.s32.totalorder %s22, 1
      %p89 = por %p87, %p88
      %p90 = scmp.ne.s32.totalorder %s79, %s80
      %p91 = scmp.eq.s32.totalorder %s22, 0
      %p92 = por %p90, %p91
      %p93 = scmp.ne.s32.totalorder %s79, %s80
      %p94 = scmp.eq.s32.totalorder %s23, 1
      %p95 = por %p93, %p94
      %p97 = scmp.ne.s32.totalorder %s80, %s96
      %p98 = scmp.eq.s32.totalorder %s23, 0
      %p99 = por %p97, %p98
      %s100 = ssub.s32 %s25, %s39
      %p101 = scmp.eq.s32.totalorder %s100, 0
      %s103 = sadd.s32 %s102, 1
      %s104 = scalar_select %p101, %s102, %s103
      %p107 = pneg %p101
      %p108 = scmp.eq.s32.totalorder %s17, 1
      %p109 = por %p107, %p108
      %p110 = scmp.ne.s32.totalorder %s102, %s105
      %p111 = scmp.eq.s32.totalorder %s17, 0
      %p112 = por %p110, %p111
      %p113 = scmp.ne.s32.totalorder %s102, %s105
      %p114 = scmp.eq.s32.totalorder %s22, 1
      %p115 = por %p113, %p114
      %p116 = scmp.ne.s32.totalorder %s105, %s106
      %p117 = scmp.eq.s32.totalorder %s22, 0
      %p118 = por %p116, %p117
      %p119 = scmp.ne.s32.totalorder %s105, %s106
      %p120 = scmp.eq.s32.totalorder %s23, 1
      %p121 = por %p119, %p120
      %p123 = scmp.ne.s32.totalorder %s106, %s122
      %p124 = scmp.eq.s32.totalorder %s23, 0
      %p125 = por %p123, %p124
      %s126 = ssub.s32 %s25, %s39
      %p127 = scmp.eq.s32.totalorder %s126, 0
      %s129 = sadd.s32 %s128, 1
      %s130 = scalar_select %p127, %s128, %s129
      %p133 = pneg %p127
      %p134 = scmp.eq.s32.totalorder %s17, 1
      %p135 = por %p133, %p134
      %p136 = scmp.ne.s32.totalorder %s128, %s131
      %p137 = scmp.eq.s32.totalorder %s17, 0
      %p138 = por %p136, %p137
      %p139 = scmp.ne.s32.totalorder %s128, %s131
      %p140 = scmp.eq.s32.totalorder %s22, 1
      %p141 = por %p139, %p140
      %p142 = scmp.ne.s32.totalorder %s131, %s132
      %p143 = scmp.eq.s32.totalorder %s22, 0
      %p144 = por %p142, %p143
      %p145 = scmp.ne.s32.totalorder %s131, %s132
      %p146 = scmp.eq.s32.totalorder %s23, 1
      %p147 = por %p145, %p146
      %p149 = scmp.ne.s32.totalorder %s132, %s148
      %p150 = scmp.eq.s32.totalorder %s23, 0
      %p151 = por %p149, %p150
      %s152 = ssub.s32 %s24, %s43
      %s153 = ssub.s32 %s25, %s39
      %s154 = sor.u32 %s152, %s153
      %p155 = scmp.eq.s32.totalorder %s154, 0
      %s157 = sadd.s32 %s156, 1
      %s158 = scalar_select %p155, %s156, %s157
      %p161 = pneg %p155
      %p162 = scmp.eq.s32.totalorder %s17, 1
      %p163 = por %p161, %p162
      %p164 = scmp.ne.s32.totalorder %s156, %s159
      %p165 = scmp.eq.s32.totalorder %s17, 0
      %p166 = por %p164, %p165
      %p167 = scmp.ne.s32.totalorder %s156, %s159
      %p168 = scmp.eq.s32.totalorder %s22, 1
      %p169 = por %p167, %p168
      %p170 = scmp.ne.s32.totalorder %s159, %s160
      %p171 = scmp.eq.s32.totalorder %s22, 0
      %p172 = por %p170, %p171
      %p173 = scmp.ne.s32.totalorder %s159, %s160
      %p174 = scmp.eq.s32.totalorder %s23, 1
      %p175 = por %p173, %p174
      %p177 = scmp.ne.s32.totalorder %s160, %s176
      %p178 = scmp.eq.s32.totalorder %s23, 0
      %p179 = por %p177, %p178
      %p180 = scmp.le.s32.totalorder 1, %s17
      %p181 = scmp.lt.s32.totalorder %s17, 3
      %p182 = pnand %p180, %p181
      %p183 = pneg %p182
      // Predicated region
      $region9: #{tpu_custom_call.1} parent=5 // pred_check
        _
      $region10: #{tpu_custom_call.1} parent=5 // pred_check_branch
        %185 = sbr.rel (%p182) target = $region12
      $region11: #{tpu_custom_call.1} parent=5 // pred_region
        %s186 = ssub.s32 %s17, 1
        // Predicated region
        $region13: #{tpu_custom_call.1} parent=11 // pred_check
          %p187 = pneg %p92
        $region14: #{tpu_custom_call.1} parent=11 // pred_check_branch
          %189 = sbr.rel (%p187) target = $region16
        $region15: #{tpu_custom_call.1} parent=11 // pred_region
          %s190 = smul.u32 4, %s29
          %192 = vsyncadd [#allocation7], 0
          %s193 = sadd.s32 %s28, %s190
          %s194 = smul.addr %s193, 8
          %s195 = scalar_lea.hbm %s1, %s194
          %s196 = sshll.u32 %s195, 4
          %s197 = int_to_ptr.hbm [resolvable:$true] %s196
          %s198 = sshll.u32 [#allocation6], 4
          %s199 = int_to_ptr.vmem [resolvable:$true] %s198
          %204 = dma.hbm_to_vmem [thread:$0]  %s197, 512, %s199, [#allocation7], 128, 128, 8
        $region16: #{tpu_custom_call.1} parent=11 // pred_fallthru
          _
        // Predicated region
        $region17: #{tpu_custom_call.1} parent=11 // pred_check
          %p205 = pneg %p118
        $region18: #{tpu_custom_call.1} parent=11 // pred_check_branch
          %207 = sbr.rel (%p205) target = $region20
        $region19: #{tpu_custom_call.1} parent=11 // pred_region
          %p208 = scmp.lt.s32.totalorder %s28, 0
          %s209 = scalar_select %p208, %s28, 0
          %s210 = scalar_lea.vmem %s2, %s209
        $region20: #{tpu_custom_call.1} parent=11 // pred_fallthru
          _
        // Predicated region
        $region21: #{tpu_custom_call.1} parent=11 // pred_check
          %p211 = pneg %p144
        $region22: #{tpu_custom_call.1} parent=11 // pred_check_branch
          %213 = sbr.rel (%p211) target = $region24
        $region23: #{tpu_custom_call.1} parent=11 // pred_region
          %p214 = scmp.lt.s32.totalorder %s28, 0
          %s215 = scalar_select %p214, %s28, 0
          %s216 = scalar_lea.vmem %s3, %s215
        $region24: #{tpu_custom_call.1} parent=11 // pred_fallthru
          _
      $region12: #{tpu_custom_call.1} parent=5 // pred_fallthru
        _
      %p217 = scmp.lt.s32.totalorder %s17, 2
      // Predicated region
      $region25: #{tpu_custom_call.1} parent=5 // pred_check
        %p218 = pneg %p217
      $region26: #{tpu_custom_call.1} parent=5 // pred_check_branch
        %220 = sbr.rel (%p218) target = $region28
      $region27: #{tpu_custom_call.1} parent=5 // pred_region
        // Predicated region
        $region29: #{tpu_custom_call.1} parent=27 // pred_check
          %p221 = pneg %p58
        $region30: #{tpu_custom_call.1} parent=27 // pred_check_branch
          %223 = sbr.rel (%p221) target = $region32
        $region31: #{tpu_custom_call.1} parent=27 // pred_region
          %s224 = sand.u32 %s48, 1
          %s225 = scalar_lea.sflag [#allocation4], %s224
          %s226 = sand.u32 %s48, 1
          %s227 = smul.addr %s226, 8
          %s228 = scalar_lea.vmem [#allocation3], %s227
          %230 = vsyncadd %s225, 0
          %s231 = sadd.s32 %s26, %s24
          %s232 = smul.addr %s231, 8
          %s233 = scalar_lea.hbm %s0, %s232
          %s235 = sshll.u32 %s233, 4
          %s236 = int_to_ptr.hbm [resolvable:$true] %s235
          %s237 = sshll.u32 %s228, 4
          %s238 = int_to_ptr.vmem [resolvable:$true] %s237
          %240 = dma.hbm_to_vmem [thread:$0]  %s236, 128, %s238, %s225
        $region32: #{tpu_custom_call.1} parent=27 // pred_fallthru
          _
      $region28: #{tpu_custom_call.1} parent=5 // pred_fallthru
        _
      %p241 = scmp.le.s32.totalorder 1, %s17
      %p242 = scmp.lt.s32.totalorder %s17, 3
      %p243 = pnand %p241, %p242
      %p244 = pneg %p243
      // Predicated region
      $region33: #{tpu_custom_call.1} parent=5 // pred_check
        _
      $region34: #{tpu_custom_call.1} parent=5 // pred_check_branch
        %246 = sbr.rel (%p243) target = $region36
      $region35: #{tpu_custom_call.1} parent=5 // pred_region
        %s247 = ssub.s32 %s17, 1
        %s248 = sand.u32 %s51, 1
        %s249 = scalar_lea.sflag [#allocation4], %s248
        %s250 = sand.u32 %s51, 1
        %s251 = smul.addr %s250, 8
        %s252 = scalar_lea.vmem [#allocation3], %s251
        // Predicated region
        $region37: #{tpu_custom_call.1} parent=35 // pred_check
          %p253 = pneg %p64
        $region38: #{tpu_custom_call.1} parent=35 // pred_check_branch
          %255 = sbr.rel (%p253) target = $region40
        $region39: #{tpu_custom_call.1} parent=35 // pred_region
          %257 = dma.done %s249, 128
        $region40: #{tpu_custom_call.1} parent=35 // pred_fallthru
          _
        // Predicated region
        $region41: #{tpu_custom_call.1} parent=35 // pred_check
          %p258 = pneg %p92
        $region42: #{tpu_custom_call.1} parent=35 // pred_check_branch
          %260 = sbr.rel (%p258) target = $region44
        $region43: #{tpu_custom_call.1} parent=35 // pred_region
          %262 = dma.done [#allocation7], 512
        $region44: #{tpu_custom_call.1} parent=35 // pred_fallthru
          _
        %s263 = sand.u32 %s51, 1
        %s264 = scalar_lea.sflag [#allocation4], %s263
        %s265 = sand.u32 %s51, 1
        %s266 = smul.addr %s265, 8
        %s267 = scalar_lea.vmem [#allocation3], %s266
        %p268 = pneg %p64
        %p269 = pneg %p61
        %p270 = pneg %p92
        %p271 = pneg %p89
        %p272 = scmp.lt.s32.totalorder %s28, 0
        %s273 = scalar_select %p272, %s28, 0
        %s274 = scalar_lea.vmem %s2, %s273
        %p275 = pneg %p118
        %p276 = pneg %p115
        %p277 = scmp.lt.s32.totalorder %s28, 0
        %s278 = scalar_select %p277, %s28, 0
        %s279 = scalar_lea.vmem %s3, %s278
        %p280 = pneg %p144
        %p281 = pneg %p141
        %p282 = pneg %p172
        %p283 = pneg %p169
        %s284 = sand.u32 %s159, 1
        %s285 = scalar_lea.sflag [#allocation5], %s284
        %s286 = sand.u32 %s159, 1
        %s287 = smul.addr %s286, 8
        %s288 = scalar_lea.vmem [#allocation8], %s287
        %s289 = smul.u32 4, %s29
        %p290 = scmp.lt.s32.totalorder %s28, 0
        %s291 = scalar_select %p290, %s28, 0
        %s292 = scalar_lea.vmem %s2, %s291
        %p293 = scmp.lt.s32.totalorder %s28, 0
        %s294 = scalar_select %p293, %s28, 0
        %s295 = scalar_lea.vmem %s3, %s294
        %p296 = scmp.eq.s32.totalorder %s29, 0
        // Predicated region
        $region45: #{tpu_custom_call.1} parent=35 // pred_check
          %p297 = pneg %p296
        $region46: #{tpu_custom_call.1} parent=35 // pred_check_branch
          %299 = sbr.rel (%p297) target = $region48
        $region47: #{tpu_custom_call.1} parent=35 // pred_region
          %300 = vst [vmem:[#allocation2] sm:$0xff] 0.0
        $region48: #{tpu_custom_call.1} parent=35 // pred_fallthru
          _
        %v301 = vld [vmem:[#allocation2] sm:$0xff]
        %v302 = vld [vmem:[%s252] sm:$0xff]
        %v303 = vld [vmem:[#allocation6] sm:$0xff]
        %v304 = vld [vmem:[#allocation6 + $0x8] sm:$0xff]
        %v305 = vld [vmem:[#allocation6 + $0x10] sm:$0xff]
        %v306 = vld [vmem:[#allocation6 + $0x18] sm:$0xff]
        %v307 = vunpack.c.0.s8 %v303
        %v308 = vunpack.c.1.s8 %v303
        %v309 = vunpack.c.2.s8 %v303
        %v310 = vunpack.c.3.s8 %v303
        %v311 = vunpack.c.0.s8 %v304
        %v312 = vunpack.c.1.s8 %v304
        %v313 = vunpack.c.2.s8 %v304
        %v314 = vunpack.c.3.s8 %v304
        %v315 = vunpack.c.0.s8 %v305
        %v316 = vunpack.c.1.s8 %v305
        %v317 = vunpack.c.2.s8 %v305
        %v318 = vunpack.c.3.s8 %v305
        %v319 = vunpack.c.0.s8 %v306
        %v320 = vunpack.c.1.s8 %v306
        %v321 = vunpack.c.2.s8 %v306
        %v322 = vunpack.c.3.s8 %v306
        %v323 = vcvt.s32.f32 %v307
        %v324 = vcvt.s32.f32 %v308
        %v325 = vcvt.s32.f32 %v309
        %v326 = vcvt.s32.f32 %v310
        %v327 = vcvt.s32.f32 %v311
        %v328 = vcvt.s32.f32 %v312
        %v329 = vcvt.s32.f32 %v313
        %v330 = vcvt.s32.f32 %v314
        %v331 = vcvt.s32.f32 %v315
        %v332 = vcvt.s32.f32 %v316
        %v333 = vcvt.s32.f32 %v317
        %v334 = vcvt.s32.f32 %v318
        %v335 = vcvt.s32.f32 %v319
        %v336 = vcvt.s32.f32 %v320
        %v337 = vcvt.s32.f32 %v321
        %v338 = vcvt.s32.f32 %v322
        %339 = vmatpush.msra.mxu0 %v338
        %340 = vmatpush.msra.mxu0 %v337
        %341 = vmatpush.msra.mxu0 %v336
        %342 = vmatpush.msra.mxu0 %v335
        %343 = vmatpush.msra.mxu0 %v334
        %344 = vmatpush.msra.mxu0 %v333
        %345 = vmatpush.msra.mxu0 %v332
        %346 = vmatpush.msra.mxu0 %v331
        %347 = vmatpush.msra.mxu0 %v330
        %348 = vmatpush.msra.mxu0 %v329
        %349 = vmatpush.msra.mxu0 %v328
        %350 = vmatpush.msra.mxu0 %v327
        %351 = vmatpush.msra.mxu0 %v326
        %352 = vmatpush.msra.mxu0 %v325
        %353 = vmatpush.msra.mxu0 %v324
        %354 = vmatpush.msra.mxu0 %v323
        %355 = vmatmul.f32.gmra.mxu0 %v302
        %v356 = vpop.f32.mrf.mxu0
        %v357 = vadd.f32 0.0, %v356
        %358 = vdwg.mxu0
        %v359 = vadd.f32 %v301, %v357
        %360 = vst [vmem:[#allocation2] sm:$0xff] %v359
        // Predicated region
        $region49: #{tpu_custom_call.1} parent=35 // pred_check
          %p361 = pneg %p296
        $region50: #{tpu_custom_call.1} parent=35 // pred_check_branch
          %363 = sbr.rel (%p361) target = $region52
        $region51: #{tpu_custom_call.1} parent=35 // pred_region
          %v364 = vld [vmem:[#allocation2] sm:$0xff]
          %v365 = vld [vmem:[%s292] sm:$0x1]
          %v367 = vperm.slane %v365, 0
          %v369 = vmul.f32 %v364, %v367
          %v370 = vld [vmem:[%s295] sm:$0x1]
          %v372 = vperm.slane %v370, 0
          %v374 = vadd.f32 %v369, %v372
          %375 = vst [vmem:[%s288] sm:$0xff] %v374
        $region52: #{tpu_custom_call.1} parent=35 // pred_fallthru
          _
        %s376 = sand.u32 %s159, 1
        %s377 = scalar_lea.sflag [#allocation5], %s376
        %s378 = sand.u32 %s159, 1
        %s379 = smul.addr %s378, 8
        %s380 = scalar_lea.vmem [#allocation8], %s379
        // Predicated region
        $region53: #{tpu_custom_call.1} parent=35 // pred_check
          %p381 = pneg %p169
        $region54: #{tpu_custom_call.1} parent=35 // pred_check_branch
          %383 = sbr.rel (%p381) target = $region56
        $region55: #{tpu_custom_call.1} parent=35 // pred_region
          %385 = vsyncadd %s377, 0
          %s386 = sadd.s32 %s28, %s27
          %s387 = smul.addr %s386, 8
          %s388 = scalar_lea.hbm %s4, %s387
          %s390 = sshll.u32 %s380, 4
          %s391 = int_to_ptr.vmem [resolvable:$true] %s390
          %s392 = sshll.u32 %s388, 4
          %s393 = int_to_ptr.hbm [resolvable:$true] %s392
          %395 = dma.vmem_to_hbm [thread:$0]  %s391, 128, %s393, %s377
        $region56: #{tpu_custom_call.1} parent=35 // pred_fallthru
          _
      $region36: #{tpu_custom_call.1} parent=5 // pred_fallthru
        _
      %p396 = scmp.le.s32.totalorder 2, %s17
      // Predicated region
      $region57: #{tpu_custom_call.1} parent=5 // pred_check
        %p397 = pneg %p396
      $region58: #{tpu_custom_call.1} parent=5 // pred_check_branch
        %399 = sbr.rel (%p397) target = $region60
      $region59: #{tpu_custom_call.1} parent=5 // pred_region
        %s400 = ssub.s32 %s17, 2
        // Predicated region
        $region61: #{tpu_custom_call.1} parent=59 // pred_check
          %p401 = pneg %p175
        $region62: #{tpu_custom_call.1} parent=59 // pred_check_branch
          %403 = sbr.rel (%p401) target = $region64
        $region63: #{tpu_custom_call.1} parent=59 // pred_region
          %s404 = sand.u32 %s160, 1
          %s405 = scalar_lea.sflag [#allocation5], %s404
          %s406 = sand.u32 %s160, 1
          %s407 = smul.addr %s406, 8
          %s408 = scalar_lea.vmem [#allocation8], %s407
          %410 = dma.done %s405, 128
        $region64: #{tpu_custom_call.1} parent=59 // pred_fallthru
          _
      $region60: #{tpu_custom_call.1} parent=5 // pred_fallthru
        _
    $region6: #{tpu_custom_call.1} parent=1 // loop_footer
      %s21 = sadd.s32 1, %s17
    $region7: #{tpu_custom_call.1} parent=1 // loop_footer_branch
      %16 = sbr.rel target = $region3
    $region8: #{tpu_custom_call.1} parent=1 // loop_exit
      _
    %411 = vsyncpa [#allocation4], 1
    %s412 = scalar_lea.sflag [#allocation4], 1
    %413 = vsyncpa %s412, 1
    %414 = vsyncpa [#allocation7], 1
    %415 = vsyncpa [#allocation5], 1
    %s416 = scalar_lea.sflag [#allocation5], 1
    %417 = vsyncpa %s416, 1

</llo_original>
